<compile_context>
chip_gen: v5e
topology: v5e:2x2
jax: 0.10.0
libtpu: 0.0.40
codegen_flags: <defaults>
</compile_context>

<pallas_src>
import functools

import jax
import jax.numpy as jnp
from jax.experimental import pallas as pl
from jax.experimental.pallas import tpu as pltpu

LANE = 128
SUBLANE_BF16 = 16
VMEM_TILE_BUDGET = 40 * 1024 * 1024   # working-set cap (v7x: 64 MiB physical / TC)
VMEM_LIMIT_BYTES = 48 * 1024 * 1024   # explicit scoped limit (v5e default is 16 MiB)


def _round_up(x, m):
    return ((x + m - 1) // m) * m


def fused_mlp_kernel(x_ref, w1_ref, b1_ref, w2_ref, b2_ref, w3_ref, b3_ref, z_ref):
    # bf16 cast happens in-kernel: the dominant activation stream is read from HBM
    # exactly once (fp32), never re-materialized by a wrapper pad/cast pass.
    x = x_ref[...].astype(jnp.bfloat16)
    # u = ReLU(x @ W1 + b1)     (mlp_1stpart; dropout=None path)
    u = jnp.dot(x, w1_ref[...], preferred_element_type=jnp.float32)
    u = jnp.maximum(u + b1_ref[...], 0.0)
    # v = ReLU(u @ W2 + b2)     (mlp_2ndpart)
    v = jnp.dot(u.astype(jnp.bfloat16), w2_ref[...],
                preferred_element_type=jnp.float32)
    v = jnp.maximum(v + b2_ref[...], 0.0)
    # z = v @ W3 + b3           (probe, no activation) -- narrow (TB, C) store
    z = jnp.dot(v.astype(jnp.bfloat16), w3_ref[...],
                preferred_element_type=jnp.float32)
    z_ref[...] = (z + b3_ref[...]).astype(z_ref.dtype)


@functools.partial(jax.jit, static_argnames=("batch_tile",))
def encoder_mlp_forward(images, params, *, batch_tile=2048):
    """images: [B, C, H, W] float32.  Returns logits [B, num_classes] float32."""
    B = images.shape[0]
    # encoder: flatten NCHW -> [B, F]   (plain-JAX glue)
    feats = images.reshape(B, -1)
    F = feats.shape[1]

    w1, b1, w2, b2, w3, b3 = params
    H1, H2, C = w1.shape[1], w2.shape[1], w3.shape[1]

    # Feature dim must be lane-aligned for the batch-tiled block; pad only if
    # needed (768 = 6*128 for the example shapes, so this is a no-op there).
    Fp = _round_up(F, LANE)
    if Fp != F:
        feats = jnp.pad(feats, ((0, 0), (0, Fp - F)))  # zero-pad is exact

    # Batch tile: multiple of 16 (bf16 sublane packing).  No full-array batch pad:
    # grid = cdiv(B, TB), partial edge block handled by Pallas (garbage rows only
    # reach discarded/masked output rows; nothing reduces over batch in-kernel).
    TB = min(_round_up(batch_tile, SUBLANE_BF16), _round_up(B, SUBLANE_BF16))

    def vmem_estimate(tb):
        # double-buffered fp32 input tile + in-kernel bf16 copy + intermediates
        # + double-buffered output tile + double-buffered bf16 weights/fp32 biases
        # + 1 MiB slack.
        return (2 * tb * Fp * 4 + tb * Fp * 2
                + tb * (H1 + H2 + C) * 8
                + 2 * tb * C * 4
                + 2 * (2 * (Fp * H1 + H1 * H2 + H2 * C) + 4 * (H1 + H2 + C))
                + (1 << 20))

    while TB > SUBLANE_BF16 and vmem_estimate(TB) > VMEM_TILE_BUDGET:
        TB //= 2

    grid = (pl.cdiv(B, TB),)

    # Weights cast once to bf16 (tiny, DMA'd once via constant index_map); biases
    # stay fp32 (bias-add / ReLU / accumulation are fp32 in-kernel).
    w1b, w2b, w3b = (w.astype(jnp.bfloat16) for w in (w1, w2, w3))
    b1f, b2f, b3f = (b.astype(jnp.float32).reshape(1, -1) for b in (b1, b2, b3))

    const = lambda i: (0, 0)   # weights/biases: same block every step -> VMEM-resident

    cost = pl.CostEstimate(
        flops=2 * B * (Fp * H1 + H1 * H2 + H2 * C),
        transcendentals=0,
        bytes_accessed=(B * Fp * 4                              # fp32 activations
                        + B * C * 4                             # logits
                        + 2 * (Fp * H1 + H1 * H2 + H2 * C)      # bf16 weights
                        + 4 * (H1 + H2 + C)))                   # fp32 biases

    z = pl.pallas_call(
        fused_mlp_kernel,
        out_shape=jax.ShapeDtypeStruct((B, C), jnp.float32),
        grid=grid,
        in_specs=[
            pl.BlockSpec((TB, Fp), lambda i: (i, 0)),   # activations: batch-tiled
            pl.BlockSpec((Fp, H1), const),
            pl.BlockSpec((1, H1), const),
            pl.BlockSpec((H1, H2), const),
            pl.BlockSpec((1, H2), const),
            pl.BlockSpec((H2, C), const),
            pl.BlockSpec((1, C), const),
        ],
        out_specs=pl.BlockSpec((TB, C), lambda i: (i, 0)),   # narrow (B, C) output
        compiler_params=pltpu.CompilerParams(
            dimension_semantics=("parallel",),     # grid steps shard across TCs on multi-core parts
            vmem_limit_bytes=VMEM_LIMIT_BYTES),
        cost_estimate=cost,
    )(feats, w1b, b1f, w2b, b2f, w3b, b3f)

    return z


def init_linear(key, fan_in, fan_out):
    """PyTorch nn.Linear default init: U(-1/sqrt(fan_in), 1/sqrt(fan_in))."""
    kw, kb = jax.random.split(key)
    bound = 1.0 / jnp.sqrt(jnp.float32(fan_in))
    # weight stored as [in, out] (transpose of PyTorch's [out, in]) -> same math
    w = jax.random.uniform(kw, (fan_in, fan_out), jnp.float32, -bound, bound)
    b = jax.random.uniform(kb, (1, fan_out), jnp.float32, -bound, bound)
    return w, b


if __name__ == "__main__":
    # Small shapes consistent with the module: input_size=(3,16,16), mlp_sizes=(32,32), 10 classes
    B, C, H, W = 2, 3, 16, 16
    F = C * H * W
    mlp_sizes = (32, 32)
    num_classes = 10

    key = jax.random.PRNGKey(0)
    k_img, k1, k2, k3 = jax.random.split(key, 4)

    images = jax.random.normal(k_img, (B, C, H, W), jnp.float32)
    w1, b1 = init_linear(k1, F, mlp_sizes[0])
    w2, b2 = init_linear(k2, mlp_sizes[0], mlp_sizes[1])
    w3, b3 = init_linear(k3, mlp_sizes[1], num_classes)
    params = (w1, b1, w2, b2, w3, b3)

    z = encoder_mlp_forward(images, params)
    z = jax.block_until_ready(z)
    assert z.shape == (B, num_classes), z.shape

    # fp32 reference (module semantics); kernel uses bf16 matmul operands with fp32
    # accumulation, so use a bf16-appropriate tolerance.
    feats = images.reshape(B, -1)
    u_ref = jnp.maximum(feats @ w1 + b1, 0.0)
    v_ref = jnp.maximum(u_ref @ w2 + b2, 0.0)
    z_ref = v_ref @ w3 + b3
    assert jnp.allclose(z, z_ref, atol=5e-2, rtol=5e-2), (
        f"mismatch vs fp32 reference: max|diff|={float(jnp.max(jnp.abs(z - z_ref)))}")

    # bf16-operand reference (same cast path as the kernel): tighter check.
    fb = feats.astype(jnp.bfloat16)
    u_b = jnp.maximum(jnp.dot(fb, w1.astype(jnp.bfloat16),
                              preferred_element_type=jnp.float32) + b1, 0.0)
    v_b = jnp.maximum(jnp.dot(u_b.astype(jnp.bfloat16), w2.astype(jnp.bfloat16),
                              preferred_element_type=jnp.float32) + b2, 0.0)
    z_b = jnp.dot(v_b.astype(jnp.bfloat16), w3.astype(jnp.bfloat16),
                  preferred_element_type=jnp.float32) + b3
    assert jnp.allclose(z, z_b, atol=2e-3, rtol=2e-3), (
        f"mismatch vs bf16 reference: max|diff|={float(jnp.max(jnp.abs(z - z_b)))}")

    print("KERNEL_OK")
</pallas_src>

<mosaic_0001>
module attributes {stable_mosaic.version = 11 : i64} {
  func.func @fused_mlp_kernel(%arg0: i32, %arg1: memref<16x768xf32, #tpu.memory_space<vmem>>, %arg2: memref<768x32xbf16, #tpu.memory_space<vmem>>, %arg3: memref<1x32xf32, #tpu.memory_space<vmem>>, %arg4: memref<32x32xbf16, #tpu.memory_space<vmem>>, %arg5: memref<1x32xf32, #tpu.memory_space<vmem>>, %arg6: memref<32x10xbf16, #tpu.memory_space<vmem>>, %arg7: memref<1x10xf32, #tpu.memory_space<vmem>>, %arg8: memref<16x10xf32, #tpu.memory_space<vmem>>) attributes {dimension_semantics = [#tpu.dimension_semantics<parallel>], iteration_bounds = array<i64: 1>, scalar_prefetch = 0 : i64, scratch_operands = 0 : i64, tpu.core_type = #tpu.core_type<tc>, window_params = [{transform_indices = @transform_0, window_bounds = array<i64: 16, 768>}, {pipeline_mode = #tpu.pipeline_mode<synchronous>, transform_indices = @transform_1, window_bounds = array<i64: 768, 32>}, {pipeline_mode = #tpu.pipeline_mode<synchronous>, transform_indices = @transform_2, window_bounds = array<i64: 1, 32>}, {pipeline_mode = #tpu.pipeline_mode<synchronous>, transform_indices = @transform_3, window_bounds = array<i64: 32, 32>}, {pipeline_mode = #tpu.pipeline_mode<synchronous>, transform_indices = @transform_4, window_bounds = array<i64: 1, 32>}, {pipeline_mode = #tpu.pipeline_mode<synchronous>, transform_indices = @transform_5, window_bounds = array<i64: 32, 10>}, {pipeline_mode = #tpu.pipeline_mode<synchronous>, transform_indices = @transform_6, window_bounds = array<i64: 1, 10>}, {transform_indices = @transform_7, window_bounds = array<i64: 16, 10>}]} {
    %c0 = arith.constant 0 : index
    %c0_0 = arith.constant 0 : index
    %0 = vector.load %arg1[%c0, %c0_0] : memref<16x768xf32, #tpu.memory_space<vmem>>, vector<16x768xf32>
    %1 = arith.truncf %0 : vector<16x768xf32> to vector<16x768xbf16>
    %c0_1 = arith.constant 0 : index
    %c0_2 = arith.constant 0 : index
    %2 = vector.load %arg2[%c0_1, %c0_2] : memref<768x32xbf16, #tpu.memory_space<vmem>>, vector<768x32xbf16>
    %cst = arith.constant dense<0.000000e+00> : vector<16x32xf32>
    %3 = tpu.matmul %1, %2, %cst {dimension_numbers = #tpu.dot_dimension_numbers<[1], [0], [0], [1], [0, 0, 1, 1], [], []>} : vector<16x768xbf16>, vector<768x32xbf16>, vector<16x32xf32> -> vector<16x32xf32>
    %c0_3 = arith.constant 0 : index
    %c0_4 = arith.constant 0 : index
    %4 = vector.load %arg3[%c0_3, %c0_4] : memref<1x32xf32, #tpu.memory_space<vmem>>, vector<1x32xf32>
    %5 = vector.broadcast %4 : vector<1x32xf32> to vector<16x32xf32>
    %6 = arith.addf %3, %5 : vector<16x32xf32>
    %cst_5 = arith.constant 0.000000e+00 : f32
    %7 = vector.broadcast %cst_5 : f32 to vector<16x32xf32>
    %8 = arith.maximumf %6, %7 : vector<16x32xf32>
    %9 = arith.truncf %8 : vector<16x32xf32> to vector<16x32xbf16>
    %c0_6 = arith.constant 0 : index
    %c0_7 = arith.constant 0 : index
    %10 = vector.load %arg4[%c0_6, %c0_7] : memref<32x32xbf16, #tpu.memory_space<vmem>>, vector<32x32xbf16>
    %cst_8 = arith.constant dense<0.000000e+00> : vector<16x32xf32>
    %11 = tpu.matmul %9, %10, %cst_8 {dimension_numbers = #tpu.dot_dimension_numbers<[1], [0], [0], [1], [0, 0, 1, 1], [], []>} : vector<16x32xbf16>, vector<32x32xbf16>, vector<16x32xf32> -> vector<16x32xf32>
    %c0_9 = arith.constant 0 : index
    %c0_10 = arith.constant 0 : index
    %12 = vector.load %arg5[%c0_9, %c0_10] : memref<1x32xf32, #tpu.memory_space<vmem>>, vector<1x32xf32>
    %13 = vector.broadcast %12 : vector<1x32xf32> to vector<16x32xf32>
    %14 = arith.addf %11, %13 : vector<16x32xf32>
    %cst_11 = arith.constant 0.000000e+00 : f32
    %15 = vector.broadcast %cst_11 : f32 to vector<16x32xf32>
    %16 = arith.maximumf %14, %15 : vector<16x32xf32>
    %17 = arith.truncf %16 : vector<16x32xf32> to vector<16x32xbf16>
    %c0_12 = arith.constant 0 : index
    %c0_13 = arith.constant 0 : index
    %18 = vector.load %arg6[%c0_12, %c0_13] : memref<32x10xbf16, #tpu.memory_space<vmem>>, vector<32x10xbf16>
    %cst_14 = arith.constant dense<0.000000e+00> : vector<16x10xf32>
    %19 = tpu.matmul %17, %18, %cst_14 {dimension_numbers = #tpu.dot_dimension_numbers<[1], [0], [0], [1], [0, 0, 1, 1], [], []>} : vector<16x32xbf16>, vector<32x10xbf16>, vector<16x10xf32> -> vector<16x10xf32>
    %c0_15 = arith.constant 0 : index
    %c0_16 = arith.constant 0 : index
    %20 = vector.load %arg7[%c0_15, %c0_16] : memref<1x10xf32, #tpu.memory_space<vmem>>, vector<1x10xf32>
    %21 = vector.broadcast %20 : vector<1x10xf32> to vector<16x10xf32>
    %22 = arith.addf %19, %21 : vector<16x10xf32>
    %c0_17 = arith.constant 0 : index
    %c0_18 = arith.constant 0 : index
    %23 = vector.load %arg8[%c0_17, %c0_18] : memref<16x10xf32, #tpu.memory_space<vmem>>, vector<16x10xf32>
    tpu.vector_store %arg8[%c0_17, %c0_18], %22 {strides = array<i32>} : memref<16x10xf32, #tpu.memory_space<vmem>>, vector<16x10xf32>,
    return
  }
  func.func @transform_0(%arg0: i32) -> (i32, i32) {
    %c0_i32 = arith.constant 0 : i32
    %c0_i32_0 = arith.constant 0 : i32
    return %arg0, %c0_i32 : i32, i32
  }
  func.func @transform_1(%arg0: i32) -> (i32, i32) {
    %c0_i32 = arith.constant 0 : i32
    %c0_i32_0 = arith.constant 0 : i32
    %c0_i32_1 = arith.constant 0 : i32
    return %c0_i32, %c0_i32_0 : i32, i32
  }
  func.func @transform_2(%arg0: i32) -> (i32, i32) {
    %c0_i32 = arith.constant 0 : i32
    %c0_i32_0 = arith.constant 0 : i32
    %c0_i32_1 = arith.constant 0 : i32
    return %c0_i32, %c0_i32_0 : i32, i32
  }
  func.func @transform_3(%arg0: i32) -> (i32, i32) {
    %c0_i32 = arith.constant 0 : i32
    %c0_i32_0 = arith.constant 0 : i32
    %c0_i32_1 = arith.constant 0 : i32
    return %c0_i32, %c0_i32_0 : i32, i32
  }
  func.func @transform_4(%arg0: i32) -> (i32, i32) {
    %c0_i32 = arith.constant 0 : i32
    %c0_i32_0 = arith.constant 0 : i32
    %c0_i32_1 = arith.constant 0 : i32
    return %c0_i32, %c0_i32_0 : i32, i32
  }
  func.func @transform_5(%arg0: i32) -> (i32, i32) {
    %c0_i32 = arith.constant 0 : i32
    %c0_i32_0 = arith.constant 0 : i32
    %c0_i32_1 = arith.constant 0 : i32
    return %c0_i32, %c0_i32_0 : i32, i32
  }
  func.func @transform_6(%arg0: i32) -> (i32, i32) {
    %c0_i32 = arith.constant 0 : i32
    %c0_i32_0 = arith.constant 0 : i32
    %c0_i32_1 = arith.constant 0 : i32
    return %c0_i32, %c0_i32_0 : i32, i32
  }
  func.func @transform_7(%arg0: i32) -> (i32, i32) {
    %c0_i32 = arith.constant 0 : i32
    %c0_i32_0 = arith.constant 0 : i32
    return %arg0, %c0_i32 : i32, i32
  }
}

</mosaic_0001>

<llo_original>
// kernel: encoder_mlp_forward.1
$region0: #{encoder_mlp_forward.1}
  #allocation0 [shape = 'u32[]', space=smem, size = 0x4, offset = 0x4, fixed_abs, tag = 'smem constant byte address 0x4 - core index']
  #allocation1 [shape = 'u32[72,128]{1,0:T(1,128)}', space=vmem, size = 0x9000, scoped, tag = 'internal scratch']
  %s0 = inlined_call_operand.vmem [shape: f32[2,768], index: 0, kind: input, shape index: {}]
  %s1 = inlined_call_operand.vmem [shape: bf16[768,32], index: 1, kind: input, shape index: {}]
  %s2 = inlined_call_operand.vmem [shape: f32[1,32], index: 2, kind: input, shape index: {}]
  %s3 = inlined_call_operand.vmem [shape: bf16[32,32], index: 3, kind: input, shape index: {}]
  %s4 = inlined_call_operand.vmem [shape: f32[1,32], index: 4, kind: input, shape index: {}]
  %s5 = inlined_call_operand.vmem [shape: bf16[32,10], index: 5, kind: input, shape index: {}]
  %s6 = inlined_call_operand.vmem [shape: f32[1,10], index: 6, kind: input, shape index: {}]
  %s7 = inlined_call_operand.hbm [shape: f32[2,10], index: 7, kind: output, shape index: {}]
  %s8 = sld [smem:[#allocation0]]
  $region38: #{encoder_mlp_forward.1} parent=0
    _
  %s10 = ssub.s32 1, %s8
  %s11 = scalar_select 0, %s10, %s8
  $region1: #{encoder_mlp_forward.1} parent=0
    #allocation2 [shape = 'u8[8192]{0}', space=vmem, size = 0x2000, scoped, tag = 'output window, operand 0, single buffered']
    #allocation3 [shape = 's32[1]{0}', space=sflag, size = 0x4, scoped, tag = 'scoped memory for encoder_mlp_forward.1']
    %12 = vsyncpa [#allocation3], 0
    // Predicated region
    $region2: #{encoder_mlp_forward.1} parent=1 // pred_check
      _
    $region3: #{encoder_mlp_forward.1} parent=1 // pred_check_branch
      %14 = sbr.rel (0) target = $region5
    $region4: #{encoder_mlp_forward.1} parent=1 // pred_region
      _
    $region5: #{encoder_mlp_forward.1} parent=1 // pred_fallthru
      _
    // Predicated region
    $region6: #{encoder_mlp_forward.1} parent=1 // pred_check
      _
    $region7: #{encoder_mlp_forward.1} parent=1 // pred_check_branch
      %16 = sbr.rel (0) target = $region9
    $region8: #{encoder_mlp_forward.1} parent=1 // pred_region
      _
    $region9: #{encoder_mlp_forward.1} parent=1 // pred_fallthru
      _
    // Predicated region
    $region10: #{encoder_mlp_forward.1} parent=1 // pred_check
      _
    $region11: #{encoder_mlp_forward.1} parent=1 // pred_check_branch
      %18 = sbr.rel (0) target = $region13
    $region12: #{encoder_mlp_forward.1} parent=1 // pred_region
      _
    $region13: #{encoder_mlp_forward.1} parent=1 // pred_fallthru
      _
    // Predicated region
    $region14: #{encoder_mlp_forward.1} parent=1 // pred_check
      _
    $region15: #{encoder_mlp_forward.1} parent=1 // pred_check_branch
      %20 = sbr.rel (0) target = $region17
    $region16: #{encoder_mlp_forward.1} parent=1 // pred_region
      _
    $region17: #{encoder_mlp_forward.1} parent=1 // pred_fallthru
      _
    // Predicated region
    $region18: #{encoder_mlp_forward.1} parent=1 // pred_check
      _
    $region19: #{encoder_mlp_forward.1} parent=1 // pred_check_branch
      %22 = sbr.rel (0) target = $region21
    $region20: #{encoder_mlp_forward.1} parent=1 // pred_region
      _
    $region21: #{encoder_mlp_forward.1} parent=1 // pred_fallthru
      _
    // Predicated region
    $region22: #{encoder_mlp_forward.1} parent=1 // pred_check
      _
    $region23: #{encoder_mlp_forward.1} parent=1 // pred_check_branch
      %24 = sbr.rel (0) target = $region25
    $region24: #{encoder_mlp_forward.1} parent=1 // pred_region
      _
    $region25: #{encoder_mlp_forward.1} parent=1 // pred_fallthru
      _
    // Predicated region
    $region26: #{encoder_mlp_forward.1} parent=1 // pred_check
      _
    $region27: #{encoder_mlp_forward.1} parent=1 // pred_check_branch
      %26 = sbr.rel (0) target = $region29
    $region28: #{encoder_mlp_forward.1} parent=1 // pred_region
      _
    $region29: #{encoder_mlp_forward.1} parent=1 // pred_fallthru
      _
    %v28 = vld [vmem:[%s0] sm:$0xff]
    %v29 = vld [vmem:[%s0 + $0x8] sm:$0xf]
    %v30 = vld [vmem:[%s0 + $0xc] sm:$0xff]
    %v31 = vld [vmem:[%s0 + $0x14] sm:$0xf]
    %v32 = vld [vmem:[%s0 + $0x18] sm:$0xff]
    %v33 = vld [vmem:[%s0 + $0x20] sm:$0xf]
    %v34 = vld [vmem:[%s0 + $0x24] sm:$0xff]
    %v35 = vld [vmem:[%s0 + $0x2c] sm:$0xf]
    %v36 = vld [vmem:[%s0 + $0x30] sm:$0xff]
    %v37 = vld [vmem:[%s0 + $0x38] sm:$0xf]
    %v38 = vld [vmem:[%s0 + $0x3c] sm:$0xff]
    %v39 = vld [vmem:[%s0 + $0x44] sm:$0xf]
    %v40 = vld [vmem:[%s0 + $0x48] sm:$0xff]
    %v41 = vld [vmem:[%s0 + $0x50] sm:$0xf]
    %v42 = vld [vmem:[%s0 + $0x54] sm:$0xff]
    %v43 = vld [vmem:[%s0 + $0x5c] sm:$0xf]
    %60 = vst [vmem:[#allocation1] ss:$4 sm:$0xff] %v28
    %s61 = scalar_lea.vmem [#allocation1], 1
    %62 = vst [vmem:[%s61] ss:$4 sm:$0xff] %v30
    %s63 = scalar_lea.vmem [#allocation1], 2
    %64 = vst [vmem:[%s63] ss:$4 sm:$0xff] %v32
    %s65 = scalar_lea.vmem [#allocation1], 3
    %66 = vst [vmem:[%s65] ss:$4 sm:$0xff] %v34
    %s67 = scalar_lea.vmem [#allocation1], 32
    %68 = vst [vmem:[%s67] ss:$4 sm:$0xff] %v29
    %s69 = scalar_lea.vmem [#allocation1], 33
    %70 = vst [vmem:[%s69] ss:$4 sm:$0xff] %v31
    %s71 = scalar_lea.vmem [#allocation1], 34
    %72 = vst [vmem:[%s71] ss:$4 sm:$0xff] %v33
    %s73 = scalar_lea.vmem [#allocation1], 35
    %74 = vst [vmem:[%s73] ss:$4 sm:$0xff] %v35
    %v75 = vld.sshfl [vmem:[#allocation1] sm:$0xff pattern:$0x73625140]
    %v76 = vld.sshfl [vmem:[#allocation1 + $0x8] sm:$0xff pattern:$0x73625140]
    %v77 = vld.sshfl [vmem:[#allocation1 + $0x10] sm:$0xff pattern:$0x73625140]
    %v78 = vld.sshfl [vmem:[#allocation1 + $0x18] sm:$0xff pattern:$0x73625140]
    %v79 = vld.sshfl [vmem:[#allocation1 + $0x20] sm:$0xff pattern:$0x73625140]
    %v80 = vld.sshfl [vmem:[#allocation1 + $0x28] sm:$0xff pattern:$0x73625140]
    %81 = vst [vmem:[#allocation1] ss:$4 sm:$0xff] %v36
    %82 = vst [vmem:[%s61] ss:$4 sm:$0xff] %v38
    %83 = vst [vmem:[%s63] ss:$4 sm:$0xff] %v40
    %84 = vst [vmem:[%s65] ss:$4 sm:$0xff] %v42
    %85 = vst [vmem:[%s67] ss:$4 sm:$0xff] %v37
    %86 = vst [vmem:[%s69] ss:$4 sm:$0xff] %v39
    %87 = vst [vmem:[%s71] ss:$4 sm:$0xff] %v41
    %88 = vst [vmem:[%s73] ss:$4 sm:$0xff] %v43
    %v89 = vld.sshfl [vmem:[#allocation1] sm:$0xff pattern:$0x73625140]
    %v90 = vld.sshfl [vmem:[#allocation1 + $0x8] sm:$0xff pattern:$0x73625140]
    %v91 = vld.sshfl [vmem:[#allocation1 + $0x10] sm:$0xff pattern:$0x73625140]
    %v92 = vld.sshfl [vmem:[#allocation1 + $0x18] sm:$0xff pattern:$0x73625140]
    %v93 = vld.sshfl [vmem:[#allocation1 + $0x20] sm:$0xff pattern:$0x73625140]
    %v94 = vld.sshfl [vmem:[#allocation1 + $0x28] sm:$0xff pattern:$0x73625140]
    %v107 = vpack.c.bf16 %v89, %v75
    %v108 = vpack.c.bf16 %v90, %v76
    %v109 = vpack.c.bf16 %v91, %v77
    %v110 = vpack.c.bf16 %v92, %v78
    %v111 = vpack.c.bf16 %v93, %v79
    %v112 = vpack.c.bf16 %v94, %v80
    %v113 = vld [vmem:[%s1] sm:$0xf]
    %v114 = vld [vmem:[%s1 + $0x4] sm:$0xf]
    %v115 = vld [vmem:[%s1 + $0x8] sm:$0xf]
    %v116 = vld [vmem:[%s1 + $0xc] sm:$0xf]
    %v117 = vld [vmem:[%s1 + $0x10] sm:$0xf]
    %v118 = vld [vmem:[%s1 + $0x14] sm:$0xf]
    %v119 = vld [vmem:[%s1 + $0x18] sm:$0xf]
    %v120 = vld [vmem:[%s1 + $0x1c] sm:$0xf]
    %v121 = vld [vmem:[%s1 + $0x20] sm:$0xf]
    %v122 = vld [vmem:[%s1 + $0x24] sm:$0xf]
    %v123 = vld [vmem:[%s1 + $0x28] sm:$0xf]
    %v124 = vld [vmem:[%s1 + $0x2c] sm:$0xf]
    %v125 = vld [vmem:[%s1 + $0x30] sm:$0xf]
    %v126 = vld [vmem:[%s1 + $0x34] sm:$0xf]
    %v127 = vld [vmem:[%s1 + $0x38] sm:$0xf]
    %v128 = vld [vmem:[%s1 + $0x3c] sm:$0xf]
    %v129 = vld [vmem:[%s1 + $0x40] sm:$0xf]
    %v130 = vld [vmem:[%s1 + $0x44] sm:$0xf]
    %v131 = vld [vmem:[%s1 + $0x48] sm:$0xf]
    %v132 = vld [vmem:[%s1 + $0x4c] sm:$0xf]
    %v133 = vld [vmem:[%s1 + $0x50] sm:$0xf]
    %v134 = vld [vmem:[%s1 + $0x54] sm:$0xf]
    %v135 = vld [vmem:[%s1 + $0x58] sm:$0xf]
    %v136 = vld [vmem:[%s1 + $0x5c] sm:$0xf]
    %v137 = vld [vmem:[%s1 + $0x60] sm:$0xf]
    %v138 = vld [vmem:[%s1 + $0x64] sm:$0xf]
    %v139 = vld [vmem:[%s1 + $0x68] sm:$0xf]
    %v140 = vld [vmem:[%s1 + $0x6c] sm:$0xf]
    %v141 = vld [vmem:[%s1 + $0x70] sm:$0xf]
    %v142 = vld [vmem:[%s1 + $0x74] sm:$0xf]
    %v143 = vld [vmem:[%s1 + $0x78] sm:$0xf]
    %v144 = vld [vmem:[%s1 + $0x7c] sm:$0xf]
    %v145 = vld [vmem:[%s1 + $0x80] sm:$0xf]
    %v146 = vld [vmem:[%s1 + $0x84] sm:$0xf]
    %v147 = vld [vmem:[%s1 + $0x88] sm:$0xf]
    %v148 = vld [vmem:[%s1 + $0x8c] sm:$0xf]
    %v149 = vld [vmem:[%s1 + $0x90] sm:$0xf]
    %v150 = vld [vmem:[%s1 + $0x94] sm:$0xf]
    %v151 = vld [vmem:[%s1 + $0x98] sm:$0xf]
    %v152 = vld [vmem:[%s1 + $0x9c] sm:$0xf]
    %v153 = vld [vmem:[%s1 + $0xa0] sm:$0xf]
    %v154 = vld [vmem:[%s1 + $0xa4] sm:$0xf]
    %v155 = vld [vmem:[%s1 + $0xa8] sm:$0xf]
    %v156 = vld [vmem:[%s1 + $0xac] sm:$0xf]
    %v157 = vld [vmem:[%s1 + $0xb0] sm:$0xf]
    %v158 = vld [vmem:[%s1 + $0xb4] sm:$0xf]
    %v159 = vld [vmem:[%s1 + $0xb8] sm:$0xf]
    %v160 = vld [vmem:[%s1 + $0xbc] sm:$0xf]
    %v161 = vld [vmem:[%s1 + $0xc0] sm:$0xf]
    %v162 = vld [vmem:[%s1 + $0xc4] sm:$0xf]
    %v163 = vld [vmem:[%s1 + $0xc8] sm:$0xf]
    %v164 = vld [vmem:[%s1 + $0xcc] sm:$0xf]
    %v165 = vld [vmem:[%s1 + $0xd0] sm:$0xf]
    %v166 = vld [vmem:[%s1 + $0xd4] sm:$0xf]
    %v167 = vld [vmem:[%s1 + $0xd8] sm:$0xf]
    %v168 = vld [vmem:[%s1 + $0xdc] sm:$0xf]
    %v169 = vld [vmem:[%s1 + $0xe0] sm:$0xf]
    %v170 = vld [vmem:[%s1 + $0xe4] sm:$0xf]
    %v171 = vld [vmem:[%s1 + $0xe8] sm:$0xf]
    %v172 = vld [vmem:[%s1 + $0xec] sm:$0xf]
    %v173 = vld [vmem:[%s1 + $0xf0] sm:$0xf]
    %v174 = vld [vmem:[%s1 + $0xf4] sm:$0xf]
    %v175 = vld [vmem:[%s1 + $0xf8] sm:$0xf]
    %v176 = vld [vmem:[%s1 + $0xfc] sm:$0xf]
    %v177 = vld [vmem:[%s1 + $0x100] sm:$0xf]
    %v178 = vld [vmem:[%s1 + $0x104] sm:$0xf]
    %v179 = vld [vmem:[%s1 + $0x108] sm:$0xf]
    %v180 = vld [vmem:[%s1 + $0x10c] sm:$0xf]
    %v181 = vld [vmem:[%s1 + $0x110] sm:$0xf]
    %v182 = vld [vmem:[%s1 + $0x114] sm:$0xf]
    %v183 = vld [vmem:[%s1 + $0x118] sm:$0xf]
    %v184 = vld [vmem:[%s1 + $0x11c] sm:$0xf]
    %v185 = vld [vmem:[%s1 + $0x120] sm:$0xf]
    %v186 = vld [vmem:[%s1 + $0x124] sm:$0xf]
    %v187 = vld [vmem:[%s1 + $0x128] sm:$0xf]
    %v188 = vld [vmem:[%s1 + $0x12c] sm:$0xf]
    %v189 = vld [vmem:[%s1 + $0x130] sm:$0xf]
    %v190 = vld [vmem:[%s1 + $0x134] sm:$0xf]
    %v191 = vld [vmem:[%s1 + $0x138] sm:$0xf]
    %v192 = vld [vmem:[%s1 + $0x13c] sm:$0xf]
    %v193 = vld [vmem:[%s1 + $0x140] sm:$0xf]
    %v194 = vld [vmem:[%s1 + $0x144] sm:$0xf]
    %v195 = vld [vmem:[%s1 + $0x148] sm:$0xf]
    %v196 = vld [vmem:[%s1 + $0x14c] sm:$0xf]
    %v197 = vld [vmem:[%s1 + $0x150] sm:$0xf]
    %v198 = vld [vmem:[%s1 + $0x154] sm:$0xf]
    %v199 = vld [vmem:[%s1 + $0x158] sm:$0xf]
    %v200 = vld [vmem:[%s1 + $0x15c] sm:$0xf]
    %v201 = vld [vmem:[%s1 + $0x160] sm:$0xf]
    %v202 = vld [vmem:[%s1 + $0x164] sm:$0xf]
    %v203 = vld [vmem:[%s1 + $0x168] sm:$0xf]
    %v204 = vld [vmem:[%s1 + $0x16c] sm:$0xf]
    %v205 = vld [vmem:[%s1 + $0x170] sm:$0xf]
    %v206 = vld [vmem:[%s1 + $0x174] sm:$0xf]
    %v207 = vld [vmem:[%s1 + $0x178] sm:$0xf]
    %v208 = vld [vmem:[%s1 + $0x17c] sm:$0xf]
    %v209 = vld [vmem:[%s2] sm:$0x1]
    %v211 = vperm.slane %v209, 0
    %v309 = vunpack.c.l.b16 %v113
    %v310 = vunpack.c.l.b16 %v114
    %v311 = vunpack.c.l.b16 %v115
    %v312 = vunpack.c.l.b16 %v116
    %v313 = vunpack.c.l.b16 %v117
    %v314 = vunpack.c.l.b16 %v118
    %v315 = vunpack.c.l.b16 %v119
    %v316 = vunpack.c.l.b16 %v120
    %v317 = vunpack.c.l.b16 %v121
    %v318 = vunpack.c.l.b16 %v122
    %v319 = vunpack.c.l.b16 %v123
    %v320 = vunpack.c.l.b16 %v124
    %v321 = vunpack.c.l.b16 %v125
    %v322 = vunpack.c.l.b16 %v126
    %v323 = vunpack.c.l.b16 %v127
    %v324 = vunpack.c.l.b16 %v128
    %v325 = vunpack.c.l.b16 %v129
    %v326 = vunpack.c.l.b16 %v130
    %v327 = vunpack.c.l.b16 %v131
    %v328 = vunpack.c.l.b16 %v132
    %v329 = vunpack.c.l.b16 %v133
    %v330 = vunpack.c.l.b16 %v134
    %v331 = vunpack.c.l.b16 %v135
    %v332 = vunpack.c.l.b16 %v136
    %v333 = vunpack.c.l.b16 %v137
    %v334 = vunpack.c.l.b16 %v138
    %v335 = vunpack.c.l.b16 %v139
    %v336 = vunpack.c.l.b16 %v140
    %v337 = vunpack.c.l.b16 %v141
    %v338 = vunpack.c.l.b16 %v142
    %v339 = vunpack.c.l.b16 %v143
    %v340 = vunpack.c.l.b16 %v144
    %v341 = vunpack.c.l.b16 %v145
    %v342 = vunpack.c.l.b16 %v146
    %v343 = vunpack.c.l.b16 %v147
    %v344 = vunpack.c.l.b16 %v148
    %v345 = vunpack.c.l.b16 %v149
    %v346 = vunpack.c.l.b16 %v150
    %v347 = vunpack.c.l.b16 %v151
    %v348 = vunpack.c.l.b16 %v152
    %v349 = vunpack.c.l.b16 %v153
    %v350 = vunpack.c.l.b16 %v154
    %v351 = vunpack.c.l.b16 %v155
    %v352 = vunpack.c.l.b16 %v156
    %v353 = vunpack.c.l.b16 %v157
    %v354 = vunpack.c.l.b16 %v158
    %v355 = vunpack.c.l.b16 %v159
    %v356 = vunpack.c.l.b16 %v160
    %v357 = vunpack.c.l.b16 %v161
    %v358 = vunpack.c.l.b16 %v162
    %v359 = vunpack.c.l.b16 %v163
    %v360 = vunpack.c.l.b16 %v164
    %v361 = vunpack.c.l.b16 %v165
    %v362 = vunpack.c.l.b16 %v166
    %v363 = vunpack.c.l.b16 %v167
    %v364 = vunpack.c.l.b16 %v168
    %v365 = vunpack.c.l.b16 %v169
    %v366 = vunpack.c.l.b16 %v170
    %v367 = vunpack.c.l.b16 %v171
    %v368 = vunpack.c.l.b16 %v172
    %v369 = vunpack.c.l.b16 %v173
    %v370 = vunpack.c.l.b16 %v174
    %v371 = vunpack.c.l.b16 %v175
    %v372 = vunpack.c.l.b16 %v176
    %v373 = vunpack.c.l.b16 %v177
    %v374 = vunpack.c.l.b16 %v178
    %v375 = vunpack.c.l.b16 %v179
    %v376 = vunpack.c.l.b16 %v180
    %v377 = vunpack.c.l.b16 %v181
    %v378 = vunpack.c.l.b16 %v182
    %v379 = vunpack.c.l.b16 %v183
    %v380 = vunpack.c.l.b16 %v184
    %v381 = vunpack.c.l.b16 %v185
    %v382 = vunpack.c.l.b16 %v186
    %v383 = vunpack.c.l.b16 %v187
    %v384 = vunpack.c.l.b16 %v188
    %v385 = vunpack.c.l.b16 %v189
    %v386 = vunpack.c.l.b16 %v190
    %v387 = vunpack.c.l.b16 %v191
    %v388 = vunpack.c.l.b16 %v192
    %v389 = vunpack.c.l.b16 %v193
    %v390 = vunpack.c.l.b16 %v194
    %v391 = vunpack.c.l.b16 %v195
    %v392 = vunpack.c.l.b16 %v196
    %v393 = vunpack.c.l.b16 %v197
    %v394 = vunpack.c.l.b16 %v198
    %v395 = vunpack.c.l.b16 %v199
    %v396 = vunpack.c.l.b16 %v200
    %v397 = vunpack.c.l.b16 %v201
    %v398 = vunpack.c.l.b16 %v202
    %v399 = vunpack.c.l.b16 %v203
    %v400 = vunpack.c.l.b16 %v204
    %v401 = vunpack.c.l.b16 %v205
    %v402 = vunpack.c.l.b16 %v206
    %v403 = vunpack.c.l.b16 %v207
    %v404 = vunpack.c.l.b16 %v208
    %v405 = vpack.c.b16 %v310, %v309
    %v406 = vpack.c.b16 %v312, %v311
    %v407 = vpack.c.b16 %v314, %v313
    %v408 = vpack.c.b16 %v316, %v315
    %v409 = vpack.c.b16 %v318, %v317
    %v410 = vpack.c.b16 %v320, %v319
    %v411 = vpack.c.b16 %v322, %v321
    %v412 = vpack.c.b16 %v324, %v323
    %v413 = vpack.c.b16 %v326, %v325
    %v414 = vpack.c.b16 %v328, %v327
    %v415 = vpack.c.b16 %v330, %v329
    %v416 = vpack.c.b16 %v332, %v331
    %v417 = vpack.c.b16 %v334, %v333
    %v418 = vpack.c.b16 %v336, %v335
    %v419 = vpack.c.b16 %v338, %v337
    %v420 = vpack.c.b16 %v340, %v339
    %v421 = vpack.c.b16 %v342, %v341
    %v422 = vpack.c.b16 %v344, %v343
    %v423 = vpack.c.b16 %v346, %v345
    %v424 = vpack.c.b16 %v348, %v347
    %v425 = vpack.c.b16 %v350, %v349
    %v426 = vpack.c.b16 %v352, %v351
    %v427 = vpack.c.b16 %v354, %v353
    %v428 = vpack.c.b16 %v356, %v355
    %v429 = vpack.c.b16 %v358, %v357
    %v430 = vpack.c.b16 %v360, %v359
    %v431 = vpack.c.b16 %v362, %v361
    %v432 = vpack.c.b16 %v364, %v363
    %v433 = vpack.c.b16 %v366, %v365
    %v434 = vpack.c.b16 %v368, %v367
    %v435 = vpack.c.b16 %v370, %v369
    %v436 = vpack.c.b16 %v372, %v371
    %v437 = vpack.c.b16 %v374, %v373
    %v438 = vpack.c.b16 %v376, %v375
    %v439 = vpack.c.b16 %v378, %v377
    %v440 = vpack.c.b16 %v380, %v379
    %v441 = vpack.c.b16 %v382, %v381
    %v442 = vpack.c.b16 %v384, %v383
    %v443 = vpack.c.b16 %v386, %v385
    %v444 = vpack.c.b16 %v388, %v387
    %v445 = vpack.c.b16 %v390, %v389
    %v446 = vpack.c.b16 %v392, %v391
    %v447 = vpack.c.b16 %v394, %v393
    %v448 = vpack.c.b16 %v396, %v395
    %v449 = vpack.c.b16 %v398, %v397
    %v450 = vpack.c.b16 %v400, %v399
    %v451 = vpack.c.b16 %v402, %v401
    %v452 = vpack.c.b16 %v404, %v403
    %501 = vmatpush.bf16.msra.mxu0 %v412
    %502 = vmatpush.bf16.msra.mxu0 %v411
    %503 = vmatpush.bf16.msra.mxu0 %v410
    %504 = vmatpush.bf16.msra.mxu0 %v409
    %505 = vmatpush.bf16.msra.mxu0 %v408
    %506 = vmatpush.bf16.msra.mxu0 %v407
    %507 = vmatpush.bf16.msra.mxu0 %v406
    %508 = vmatpush.bf16.msra.mxu0 %v405
    %509 = vmatmul.bf16.gmra.mxu0 %v107
    %v510 = vpop.f32.mrf.mxu0
    %v511 = vadd.f32 %v211, %v510
    %v512 = vpop.f32.mrf.mxu0
    %v513 = vadd.f32 %v211, %v512
    %514 = vdwg.mxu0
    %515 = vmatpush.bf16.msra.mxu0 %v420
    %516 = vmatpush.bf16.msra.mxu0 %v419
    %517 = vmatpush.bf16.msra.mxu0 %v418
    %518 = vmatpush.bf16.msra.mxu0 %v417
    %519 = vmatpush.bf16.msra.mxu0 %v416
    %520 = vmatpush.bf16.msra.mxu0 %v415
    %521 = vmatpush.bf16.msra.mxu0 %v414
    %522 = vmatpush.bf16.msra.mxu0 %v413
    %523 = vmatmul.bf16.gmra.mxu0 %v108
    %v524 = vpop.f32.mrf.mxu0
    %v525 = vadd.f32 %v511, %v524
    %v526 = vpop.f32.mrf.mxu0
    %v527 = vadd.f32 %v513, %v526
    %528 = vdwg.mxu0
    %529 = vmatpush.bf16.msra.mxu0 %v428
    %530 = vmatpush.bf16.msra.mxu0 %v427
    %531 = vmatpush.bf16.msra.mxu0 %v426
    %532 = vmatpush.bf16.msra.mxu0 %v425
    %533 = vmatpush.bf16.msra.mxu0 %v424
    %534 = vmatpush.bf16.msra.mxu0 %v423
    %535 = vmatpush.bf16.msra.mxu0 %v422
    %536 = vmatpush.bf16.msra.mxu0 %v421
    %537 = vmatmul.bf16.gmra.mxu0 %v109
    %v538 = vpop.f32.mrf.mxu0
    %v539 = vadd.f32 %v525, %v538
    %v540 = vpop.f32.mrf.mxu0
    %v541 = vadd.f32 %v527, %v540
    %542 = vdwg.mxu0
    %543 = vmatpush.bf16.msra.mxu0 %v436
    %544 = vmatpush.bf16.msra.mxu0 %v435
    %545 = vmatpush.bf16.msra.mxu0 %v434
    %546 = vmatpush.bf16.msra.mxu0 %v433
    %547 = vmatpush.bf16.msra.mxu0 %v432
    %548 = vmatpush.bf16.msra.mxu0 %v431
    %549 = vmatpush.bf16.msra.mxu0 %v430
    %550 = vmatpush.bf16.msra.mxu0 %v429
    %551 = vmatmul.bf16.gmra.mxu0 %v110
    %v552 = vpop.f32.mrf.mxu0
    %v553 = vadd.f32 %v539, %v552
    %v554 = vpop.f32.mrf.mxu0
    %v555 = vadd.f32 %v541, %v554
    %556 = vdwg.mxu0
    %557 = vmatpush.bf16.msra.mxu0 %v444
    %558 = vmatpush.bf16.msra.mxu0 %v443
    %559 = vmatpush.bf16.msra.mxu0 %v442
    %560 = vmatpush.bf16.msra.mxu0 %v441
    %561 = vmatpush.bf16.msra.mxu0 %v440
    %562 = vmatpush.bf16.msra.mxu0 %v439
    %563 = vmatpush.bf16.msra.mxu0 %v438
    %564 = vmatpush.bf16.msra.mxu0 %v437
    %565 = vmatmul.bf16.gmra.mxu0 %v111
    %v566 = vpop.f32.mrf.mxu0
    %v567 = vadd.f32 %v553, %v566
    %v568 = vpop.f32.mrf.mxu0
    %v569 = vadd.f32 %v555, %v568
    %570 = vdwg.mxu0
    %571 = vmatpush.bf16.msra.mxu0 %v452
    %572 = vmatpush.bf16.msra.mxu0 %v451
    %573 = vmatpush.bf16.msra.mxu0 %v450
    %574 = vmatpush.bf16.msra.mxu0 %v449
    %575 = vmatpush.bf16.msra.mxu0 %v448
    %576 = vmatpush.bf16.msra.mxu0 %v447
    %577 = vmatpush.bf16.msra.mxu0 %v446
    %578 = vmatpush.bf16.msra.mxu0 %v445
    %579 = vmatmul.bf16.gmra.mxu0 %v112
    %v580 = vpop.f32.mrf.mxu0
    %v581 = vadd.f32 %v567, %v580
    %v582 = vpop.f32.mrf.mxu0
    %v583 = vadd.f32 %v569, %v582
    %584 = vdwg.mxu0
    %v585 = vmax.f32 %v581, 0.0
    %v586 = vmax.f32 %v583, 0.0
    %v587 = vpack.c.bf16 %v586, %v585
    %v588 = vld [vmem:[%s3] sm:$0xf]
    %v589 = vld [vmem:[%s3 + $0x4] sm:$0xf]
    %v590 = vld [vmem:[%s3 + $0x8] sm:$0xf]
    %v591 = vld [vmem:[%s3 + $0xc] sm:$0xf]
    %v592 = vld [vmem:[%s4] sm:$0x1]
    %v594 = vperm.slane %v592, 0
    %v600 = vunpack.c.l.b16 %v588
    %v601 = vunpack.c.l.b16 %v589
    %v602 = vunpack.c.l.b16 %v590
    %v603 = vunpack.c.l.b16 %v591
    %v604 = vpack.c.b16 %v601, %v600
    %v605 = vpack.c.b16 %v603, %v602
    %vm608 = vcmask 261120
    %v610 = vsel %vm608, %v587, 0
    %612 = vmatpush.bf16.msra.mxu0 0
    %613 = vmatpush.bf16.msra.mxu0 0
    %614 = vmatpush.bf16.msra.mxu0 0
    %615 = vmatpush.bf16.msra.mxu0 0
    %616 = vmatpush.bf16.msra.mxu0 0
    %617 = vmatpush.bf16.msra.mxu0 0
    %618 = vmatpush.bf16.msra.mxu0 %v605
    %619 = vmatpush.bf16.msra.mxu0 %v604
    %620 = vmatmul.bf16.gmra.mxu0 %v610
    %v621 = vpop.f32.mrf.mxu0
    %v622 = vadd.f32 %v594, %v621
    %v623 = vpop.f32.mrf.mxu0
    %v624 = vadd.f32 %v594, %v623
    %625 = vdwg.mxu0
    %v626 = vmax.f32 %v622, 0.0
    %v627 = vmax.f32 %v624, 0.0
    %v628 = vpack.c.bf16 %v627, %v626
    %v629 = vld [vmem:[%s5] sm:$0xf]
    %v630 = vld [vmem:[%s5 + $0x4] sm:$0xf]
    %v631 = vld [vmem:[%s5 + $0x8] sm:$0xf]
    %v632 = vld [vmem:[%s5 + $0xc] sm:$0xf]
    %v633 = vld [vmem:[%s6] sm:$0x1]
    %v635 = vperm.slane %v633, 0
    %v641 = vunpack.c.l.b16 %v629
    %v642 = vunpack.c.l.b16 %v630
    %v643 = vunpack.c.l.b16 %v631
    %v644 = vunpack.c.l.b16 %v632
    %v645 = vpack.c.b16 %v642, %v641
    %v646 = vpack.c.b16 %v644, %v643
    %v650 = vsel %vm608, %v628, 0
    %652 = vmatpush.bf16.msra.mxu0 0
    %653 = vmatpush.bf16.msra.mxu0 0
    %654 = vmatpush.bf16.msra.mxu0 0
    %655 = vmatpush.bf16.msra.mxu0 0
    %656 = vmatpush.bf16.msra.mxu0 0
    %657 = vmatpush.bf16.msra.mxu0 0
    %658 = vmatpush.bf16.msra.mxu0 %v646
    %659 = vmatpush.bf16.msra.mxu0 %v645
    %660 = vmatmul.bf16.gmra.mxu0 %v650
    %v661 = vpop.f32.mrf.mxu0
    %v662 = vadd.f32 %v635, %v661
    %v663 = vpop.f32.mrf.mxu0
    %v664 = vadd.f32 %v635, %v663
    %665 = vdwg.mxu0
    %vm666 = vcmask 80896
    %667 = vst.msk [vmem:[#allocation2] sm:$0xff] %vm666, %v662
    %668 = vst.msk [vmem:[#allocation2 + $0x8] sm:$0xff] %vm666, %v664
    // Predicated region
    $region30: #{encoder_mlp_forward.1} parent=1 // pred_check
      _
    $region31: #{encoder_mlp_forward.1} parent=1 // pred_check_branch
      %670 = sbr.rel (0) target = $region33
    $region32: #{encoder_mlp_forward.1} parent=1 // pred_region
      %672 = vsyncadd [#allocation3], 224
      %s673 = sshll.u32 [#allocation2], 4
      %s674 = int_to_ptr.vmem [resolvable:$true] %s673
      %s675 = sshll.u32 %s7, 4
      %s676 = int_to_ptr.hbm [resolvable:$true] %s675
      %681 = dma.vmem_to_hbm [thread:$0]  %s674, 32, %s676, [#allocation3], 32, 32, 2
    $region33: #{encoder_mlp_forward.1} parent=1 // pred_fallthru
      _
    // Predicated region
    $region34: #{encoder_mlp_forward.1} parent=1 // pred_check
      _
    $region35: #{encoder_mlp_forward.1} parent=1 // pred_check_branch
      %683 = sbr.rel (0) target = $region37
    $region36: #{encoder_mlp_forward.1} parent=1 // pred_region
      %685 = dma.done [#allocation3], 256
    $region37: #{encoder_mlp_forward.1} parent=1 // pred_fallthru
      _
    %686 = vsyncpa [#allocation3], 1

</llo_original>
